<compile_context>
chip_gen: v7x
topology: tpu7x:2x2x1
jax: 0.10.0
libtpu: 0.0.40
codegen_flags: <defaults>
</compile_context>

<pallas_src>
import math
from functools import partial

import jax
import jax.numpy as jnp
from jax.experimental import pallas as pl
from jax.experimental.pallas import tpu as pltpu


# ---------------------------------------------------------------------------
# Linear:  y = x @ W + b   (W stored as (in_features, out_features))
# ---------------------------------------------------------------------------
def _linear_kernel(x_ref, w_ref, b_ref, o_ref):
    y = jnp.dot(x_ref[...], w_ref[...], preferred_element_type=jnp.float32)
    o_ref[...] = (y + b_ref[...]).astype(o_ref.dtype)


def linear_forward(x2d: jax.Array, w_t: jax.Array, b: jax.Array,
                   *, max_tile_m: int = 512) -> jax.Array:
    """x2d: (M, K); w_t: (K, N) (already transposed); b: (N,)."""
    M, K = x2d.shape
    N = w_t.shape[1]
    tm = M if M <= max_tile_m else max_tile_m          # full block or 512-row tiles
    grid = (pl.cdiv(M, tm),)
    return pl.pallas_call(
        _linear_kernel,
        out_shape=jax.ShapeDtypeStruct((M, N), x2d.dtype),
        grid=grid,
        in_specs=[
            pl.BlockSpec((tm, K), lambda i: (i, 0)),
            pl.BlockSpec((K, N), lambda i: (0, 0)),    # weight stays VMEM-resident
            pl.BlockSpec((1, N), lambda i: (0, 0)),
        ],
        out_specs=pl.BlockSpec((tm, N), lambda i: (i, 0)),
        compiler_params=pltpu.CompilerParams(dimension_semantics=("parallel",)),
    )(x2d, w_t, b.reshape(1, N))


# ---------------------------------------------------------------------------
# Scaled dot-product attention, one (batch, head) tile per grid step.
# ---------------------------------------------------------------------------
def _make_attn_kernel(d_k: int, dropout_p: float, has_mask: bool, training: bool):
    scale = 1.0 / math.sqrt(d_k)
    apply_dropout = training and dropout_p > 0.0
    if apply_dropout:
        keep_thresh = min(int(round((1.0 - dropout_p) * (2 ** 32))), 2 ** 32 - 1)
        inv_keep = 1.0 / (1.0 - dropout_p)

    def kernel(*refs):
        idx = 0
        q_ref = refs[idx]; idx += 1
        k_ref = refs[idx]; idx += 1
        v_ref = refs[idx]; idx += 1
        hs_ref = refs[idx]; idx += 1                    # per-head prune scale (SMEM)
        if has_mask:
            mask_ref = refs[idx]; idx += 1
        if apply_dropout:
            seed_ref = refs[idx]; idx += 1
        o_ref = refs[idx]; idx += 1
        p_ref = refs[idx]

        q = q_ref[0, 0]          # (Sq, d_k)
        k = k_ref[0, 0]          # (Sk, d_k)
        v = v_ref[0, 0]          # (Sk, d_k)

        # scores = q @ k^T / sqrt(d_k)
        s = jax.lax.dot_general(q, k, (((1,), (1,)), ((), ())),
                                preferred_element_type=jnp.float32) * scale
        if has_mask:
            s = jnp.where(mask_ref[0] == 0, jnp.float32(-1e9), s)

        # numerically stable softmax along the key axis
        s_max = jnp.max(s, axis=-1, keepdims=True)
        e = jnp.exp(s - s_max)
        p = e / jnp.sum(e, axis=-1, keepdims=True)

        if apply_dropout:
            # per-(batch, head) seed so every grid step draws a distinct mask
            pltpu.prng_seed(seed_ref[0]
                            + pl.program_id(0) * pl.num_programs(1)
                            + pl.program_id(1))
            bits = pltpu.bitcast(pltpu.prng_random_bits(p.shape), jnp.uint32)
            keep = bits < jnp.uint32(keep_thresh)       # single uint32 compare
            p = jnp.where(keep, p * inv_keep, 0.0)

        p_ref[0, 0] = p.astype(p_ref.dtype)             # == module's self.attn

        head_scale = hs_ref[pl.program_id(1)]           # fused prune-mask scale
        o = jnp.dot(p.astype(v.dtype), v, preferred_element_type=jnp.float32)
        o_ref[0, 0] = (o * head_scale).astype(o_ref.dtype)

    return kernel


def attention_heads(q, k, v, head_scale, mask=None, *,
                    dropout_p: float = 0.1, training: bool = False, seed: int = 0):
    """q,k,v: (B, h, S, d_k). Returns (context (B,h,Sq,d_k), attn (B,h,Sq,Sk))."""
    B, H, Sq, dk = q.shape
    Sk = k.shape[2]
    has_mask = mask is not None
    apply_dropout = training and dropout_p > 0.0

    kernel = _make_attn_kernel(dk, dropout_p, has_mask, training)

    in_specs = [
        pl.BlockSpec((1, 1, Sq, dk), lambda b, h: (b, h, 0, 0)),
        pl.BlockSpec((1, 1, Sk, dk), lambda b, h: (b, h, 0, 0)),
        pl.BlockSpec((1, 1, Sk, dk), lambda b, h: (b, h, 0, 0)),
        pl.BlockSpec(memory_space=pltpu.MemorySpace.SMEM),       # head_scale (H,)
    ]
    inputs = [q, k, v, head_scale.astype(jnp.float32)]
    if has_mask:
        in_specs.append(pl.BlockSpec((1, Sq, Sk), lambda b, h: (b, 0, 0)))
        inputs.append(mask.astype(jnp.int32))
    if apply_dropout:
        in_specs.append(pl.BlockSpec(memory_space=pltpu.MemorySpace.SMEM))
        inputs.append(jnp.asarray([seed], dtype=jnp.int32))

    out_shape = (jax.ShapeDtypeStruct((B, H, Sq, dk), q.dtype),
                 jax.ShapeDtypeStruct((B, H, Sq, Sk), jnp.float32))
    out_specs = (pl.BlockSpec((1, 1, Sq, dk), lambda b, h: (b, h, 0, 0)),
                 pl.BlockSpec((1, 1, Sq, Sk), lambda b, h: (b, h, 0, 0)))

    return pl.pallas_call(
        kernel,
        grid=(B, H),
        out_shape=out_shape,
        in_specs=in_specs,
        out_specs=out_specs,
        compiler_params=pltpu.CompilerParams(
            dimension_semantics=("parallel", "parallel")),
    )(*inputs)


# ---------------------------------------------------------------------------
# PruneMask (tiny per-head vector — computed in plain JAX, consumed in-kernel)
# ---------------------------------------------------------------------------
def prune_mask_value(log_alpha, *, training: bool, rng_key=None,
                     beta: float = 1.0, stretch: float = 0.1):
    limit_l, limit_r = -stretch, 1.0 + stretch
    if training:
        u = jax.random.uniform(rng_key, log_alpha.shape,
                               minval=1e-6, maxval=1.0 - 1e-6)
        s = jax.nn.sigmoid((jnp.log(u) - jnp.log(1.0 - u) + log_alpha) / beta)
        s = s * (limit_r - limit_l) + limit_l
        return jnp.clip(s, 0.0, 1.0).astype(jnp.float32)
    soft = jax.nn.sigmoid(log_alpha / beta)
    return (soft > 0.5).astype(jnp.float32)


# ---------------------------------------------------------------------------
# Full module forward
# ---------------------------------------------------------------------------
def init_mha_prune_params(key, d_model: int, h: int, dtype=jnp.float32):
    ks = jax.random.split(key, 9)
    bound = 1.0 / math.sqrt(d_model)

    def lin(kw, kb):
        w = jax.random.uniform(kw, (d_model, d_model), dtype, -bound, bound)  # (in,out)
        b = jax.random.uniform(kb, (d_model,), dtype, -bound, bound)
        return w, b

    wq, bq = lin(ks[0], ks[1])
    wk, bk = lin(ks[2], ks[3])
    wv, bv = lin(ks[4], ks[5])
    wo, bo = lin(ks[6], ks[7])
    # PruneMask init: Normal(log(1-0.5)-log(0.5)=0, 0.01)
    log_alpha = 0.01 * jax.random.normal(ks[8], (h,), dtype)
    return dict(wq=wq, bq=bq, wk=wk, bk=bk, wv=wv, bv=bv, wo=wo, bo=bo,
                log_alpha=log_alpha)


def multihead_attention_prune_forward(params, query, key, value, mask=None, *,
                                      h: int, dropout_p: float = 0.1,
                                      training: bool = False,
                                      use_prune_mask: bool = False,
                                      seed: int = 0, prune_rng=None,
                                      beta: float = 1.0, stretch: float = 0.1):
    """query/key/value: (B, S, d_model); mask: optional (B, Sq, Sk).
    Returns (output (B, Sq, d_model), attn (B, h, Sq, Sk))."""
    B, Sq, d_model = query.shape
    Sk = key.shape[1]
    d_k = d_model // h

    def project(x, w, b, S):
        y = linear_forward(x.reshape(B * S, d_model), w, b)
        return y.reshape(B, S, h, d_k).transpose(0, 2, 1, 3)   # (B, h, S, d_k)

    q = project(query, params["wq"], params["bq"], Sq)
    k = project(key,   params["wk"], params["bk"], Sk)
    v = project(value, params["wv"], params["bv"], Sk)

    if use_prune_mask:
        head_scale = prune_mask_value(params["log_alpha"], training=training,
                                      rng_key=prune_rng, beta=beta, stretch=stretch)
    else:
        head_scale = jnp.ones((h,), jnp.float32)

    x, attn = attention_heads(q, k, v, head_scale, mask,
                              dropout_p=dropout_p, training=training, seed=seed)

    # merge heads (layout plumbing, plain JAX) + output projection kernel
    x = x.transpose(0, 2, 1, 3).reshape(B * Sq, h * d_k)
    out = linear_forward(x, params["wo"], params["bo"]).reshape(B, Sq, d_model)
    return out, attn


# ---------------------------------------------------------------------------
# Pure-JAX reference (eval mode) for correctness checks
# ---------------------------------------------------------------------------
def reference_forward(params, query, key, value, mask=None, *, h: int,
                      use_prune_mask: bool = False):
    B, Sq, d_model = query.shape
    Sk = key.shape[1]
    d_k = d_model // h

    def lin(x, w, b):
        return x @ w + b

    q = lin(query, params["wq"], params["bq"]).reshape(B, Sq, h, d_k).transpose(0, 2, 1, 3)
    k = lin(key,   params["wk"], params["bk"]).reshape(B, Sk, h, d_k).transpose(0, 2, 1, 3)
    v = lin(value, params["wv"], params["bv"]).reshape(B, Sk, h, d_k).transpose(0, 2, 1, 3)
    s = jnp.einsum("bhqd,bhkd->bhqk", q, k) / math.sqrt(d_k)
    if mask is not None:
        s = jnp.where(mask[:, None] == 0, -1e9, s)
    p = jax.nn.softmax(s, axis=-1)
    x = jnp.einsum("bhqk,bhkd->bhqd", p, v)
    if use_prune_mask:
        hs = (jax.nn.sigmoid(params["log_alpha"]) > 0.5).astype(x.dtype)
        x = x * hs.reshape(1, h, 1, 1)
    x = x.transpose(0, 2, 1, 3).reshape(B, Sq, d_model)
    return lin(x, params["wo"], params["bo"]), p


# ---------------------------------------------------------------------------
# demo / self-check
# ---------------------------------------------------------------------------
if __name__ == "__main__":
    B, S, D_MODEL, H = 2, 8, 32, 4          # batch=2, seq=8, d_model=32, heads=4

    root = jax.random.PRNGKey(0)
    kp, kq, kk, kv = jax.random.split(root, 4)
    params = init_mha_prune_params(kp, D_MODEL, H)

    query = jax.random.normal(kq, (B, S, D_MODEL), jnp.float32)
    key_in = jax.random.normal(kk, (B, S, D_MODEL), jnp.float32)
    value = jax.random.normal(kv, (B, S, D_MODEL), jnp.float32)

    # 1) eval forward, no mask, no pruning (module defaults)
    out, attn = multihead_attention_prune_forward(
        params, query, key_in, value, mask=None,
        h=H, dropout_p=0.1, training=False, use_prune_mask=False)
    out = jax.block_until_ready(out)
    attn = jax.block_until_ready(attn)
    ref_out, ref_attn = reference_forward(params, query, key_in, value, mask=None, h=H)
    assert out.shape == (B, S, D_MODEL) and attn.shape == (B, H, S, S)
    assert jnp.allclose(out, ref_out, atol=2e-2, rtol=2e-2)
    assert jnp.allclose(attn, ref_attn, atol=2e-2, rtol=2e-2)

    # 2) eval forward with a causal attention mask
    causal = jnp.broadcast_to(jnp.tril(jnp.ones((S, S), jnp.int32)), (B, S, S))
    out_m, attn_m = multihead_attention_prune_forward(
        params, query, key_in, value, mask=causal, h=H, training=False)
    out_m = jax.block_until_ready(out_m)
    ref_out_m, ref_attn_m = reference_forward(params, query, key_in, value,
                                              mask=causal, h=H)
    assert jnp.allclose(out_m, ref_out_m, atol=2e-2, rtol=2e-2)
    assert jnp.allclose(attn_m, ref_attn_m, atol=2e-2, rtol=2e-2)

    # 3) eval forward with the (hard-thresholded) prune mask fused in-kernel
    out_p, _ = multihead_attention_prune_forward(
        params, query, key_in, value, mask=None, h=H,
        training=False, use_prune_mask=True)
    out_p = jax.block_until_ready(out_p)
    ref_out_p, _ = reference_forward(params, query, key_in, value, mask=None,
                                     h=H, use_prune_mask=True)
    assert jnp.allclose(out_p, ref_out_p, atol=2e-2, rtol=2e-2)

    # TODO(synk): training-mode attention dropout / hard-concrete prune sampling are
    # implemented (TPU PRNG / jax.random) but cannot match torch's RNG stream bit-for-bit.
    print("KERNEL_OK")
</pallas_src>

<mosaic_0001>
module attributes {stable_mosaic.version = 11 : i64} {
  func.func @_linear_kernel(%arg0: i32, %arg1: memref<16x32xf32, #tpu.memory_space<vmem>>, %arg2: memref<32x32xf32, #tpu.memory_space<vmem>>, %arg3: memref<1x32xf32, #tpu.memory_space<vmem>>, %arg4: memref<16x32xf32, #tpu.memory_space<vmem>>) attributes {dimension_semantics = [#tpu.dimension_semantics<parallel>], iteration_bounds = array<i64: 1>, scalar_prefetch = 0 : i64, scratch_operands = 0 : i64, tpu.core_type = #tpu.core_type<tc>, window_params = [{transform_indices = @transform_0, window_bounds = array<i64: 16, 32>}, {pipeline_mode = #tpu.pipeline_mode<synchronous>, transform_indices = @transform_1, window_bounds = array<i64: 32, 32>}, {pipeline_mode = #tpu.pipeline_mode<synchronous>, transform_indices = @transform_2, window_bounds = array<i64: 1, 32>}, {transform_indices = @transform_3, window_bounds = array<i64: 16, 32>}]} {
    %c0 = arith.constant 0 : index
    %c0_0 = arith.constant 0 : index
    %0 = vector.load %arg1[%c0, %c0_0] : memref<16x32xf32, #tpu.memory_space<vmem>>, vector<16x32xf32>
    %c0_1 = arith.constant 0 : index
    %c0_2 = arith.constant 0 : index
    %1 = vector.load %arg2[%c0_1, %c0_2] : memref<32x32xf32, #tpu.memory_space<vmem>>, vector<32x32xf32>
    %cst = arith.constant dense<0.000000e+00> : vector<16x32xf32>
    %2 = tpu.matmul %0, %1, %cst {dimension_numbers = #tpu.dot_dimension_numbers<[1], [0], [0], [1], [0, 0, 1, 1], [], []>} : vector<16x32xf32>, vector<32x32xf32>, vector<16x32xf32> -> vector<16x32xf32>
    %c0_3 = arith.constant 0 : index
    %c0_4 = arith.constant 0 : index
    %3 = vector.load %arg3[%c0_3, %c0_4] : memref<1x32xf32, #tpu.memory_space<vmem>>, vector<1x32xf32>
    %4 = vector.broadcast %3 : vector<1x32xf32> to vector<16x32xf32>
    %5 = arith.addf %2, %4 : vector<16x32xf32>
    %c0_5 = arith.constant 0 : index
    %c0_6 = arith.constant 0 : index
    %6 = vector.load %arg4[%c0_5, %c0_6] : memref<16x32xf32, #tpu.memory_space<vmem>>, vector<16x32xf32>
    tpu.vector_store %arg4[%c0_5, %c0_6], %5 {strides = array<i32>} : memref<16x32xf32, #tpu.memory_space<vmem>>, vector<16x32xf32>,
    return
  }
  func.func @transform_0(%arg0: i32) -> (i32, i32) {
    %c0_i32 = arith.constant 0 : i32
    %c0_i32_0 = arith.constant 0 : i32
    return %arg0, %c0_i32 : i32, i32
  }
  func.func @transform_1(%arg0: i32) -> (i32, i32) {
    %c0_i32 = arith.constant 0 : i32
    %c0_i32_0 = arith.constant 0 : i32
    %c0_i32_1 = arith.constant 0 : i32
    return %c0_i32, %c0_i32_0 : i32, i32
  }
  func.func @transform_2(%arg0: i32) -> (i32, i32) {
    %c0_i32 = arith.constant 0 : i32
    %c0_i32_0 = arith.constant 0 : i32
    %c0_i32_1 = arith.constant 0 : i32
    return %c0_i32, %c0_i32_0 : i32, i32
  }
  func.func @transform_3(%arg0: i32) -> (i32, i32) {
    %c0_i32 = arith.constant 0 : i32
    %c0_i32_0 = arith.constant 0 : i32
    return %arg0, %c0_i32 : i32, i32
  }
}

</mosaic_0001>

<llo_original>
// kernel: tpu_custom_call.1
$region0: #{tpu_custom_call.1}
  #allocation0 [shape = 'u32[]', space=smem, size = 0x4, offset = 0x4, fixed_abs, tag = 'smem constant byte address 0x4 - core index']
  #allocation1 [shape = 'u32[144,128]{1,0:T(1,128)}', space=vmem, size = 0x12000, scoped, tag = 'internal scratch']
  %s0 = inlined_call_operand.hbm [shape: f32[16,32], index: 0, kind: input, shape index: {}]
  %s1 = inlined_call_operand.hbm [shape: f32[32,32], index: 1, kind: input, shape index: {}]
  %s2 = inlined_call_operand.vmem [shape: f32[1,32], index: 2, kind: input, shape index: {}]
  %s3 = inlined_call_operand.hbm [shape: f32[16,32], index: 3, kind: output, shape index: {}]
  %s4 = sld [smem:[#allocation0]]
  $region30: #{tpu_custom_call.1} parent=0
    _
  %s6 = ssub.s32 1, %s4
  %s7 = scalar_select 0, %s6, %s4
  $region1: #{tpu_custom_call.1} parent=0
    #allocation2 [shape = 'u8[8192]{0}', space=vmem, size = 0x2000, scoped, tag = 'input window, operand 0, single buffered']
    #allocation3 [shape = 's32[1]{0}', space=sflag, size = 0x4, scoped, tag = 'scoped memory for tpu_custom_call.1']
    #allocation4 [shape = 's32[1]{0}', space=sflag, size = 0x4, scoped, tag = 'scoped memory for tpu_custom_call.1']
    #allocation5 [shape = 'u8[16384]{0}', space=vmem, size = 0x4000, scoped, tag = 'input window, operand 1, single buffered']
    #allocation6 [shape = 's32[1]{0}', space=sflag, size = 0x4, scoped, tag = 'scoped memory for tpu_custom_call.1']
    #allocation7 [shape = 'u8[8192]{0}', space=vmem, size = 0x2000, scoped, tag = 'output window, operand 0, single buffered']
    %8 = vsyncpa [#allocation3], 0
    %9 = vsyncpa [#allocation6], 0
    %10 = vsyncpa [#allocation4], 0
    // Predicated region
    $region2: #{tpu_custom_call.1} parent=1 // pred_check
      _
    $region3: #{tpu_custom_call.1} parent=1 // pred_check_branch
      %12 = sbr.rel (0) target = $region5
    $region4: #{tpu_custom_call.1} parent=1 // pred_region
      %s14 = ssub.s32 256, 256
      %15 = vsyncadd [#allocation3], %s14
      %s16 = sshll.u32 [#allocation2], 4
      %s17 = int_to_ptr.vmem [resolvable:$true] %s16
      %22 = dma.hbm_to_vmem [thread:$0]  %s0, 256, %s17, [#allocation3], 128, 128, 8
    $region5: #{tpu_custom_call.1} parent=1 // pred_fallthru
      _
    // Predicated region
    $region6: #{tpu_custom_call.1} parent=1 // pred_check
      _
    $region7: #{tpu_custom_call.1} parent=1 // pred_check_branch
      %24 = sbr.rel (0) target = $region9
    $region8: #{tpu_custom_call.1} parent=1 // pred_region
      %s26 = ssub.s32 512, 512
      %27 = vsyncadd [#allocation6], %s26
      %s28 = sshll.u32 [#allocation5], 4
      %s29 = int_to_ptr.vmem [resolvable:$true] %s28
      %34 = dma.hbm_to_vmem [thread:$0]  %s1, 512, %s29, [#allocation6], 128, 128, 8
    $region9: #{tpu_custom_call.1} parent=1 // pred_fallthru
      _
    // Predicated region
    $region10: #{tpu_custom_call.1} parent=1 // pred_check
      _
    $region11: #{tpu_custom_call.1} parent=1 // pred_check_branch
      %36 = sbr.rel (0) target = $region13
    $region12: #{tpu_custom_call.1} parent=1 // pred_region
      _
    $region13: #{tpu_custom_call.1} parent=1 // pred_fallthru
      _
    // Predicated region
    $region14: #{tpu_custom_call.1} parent=1 // pred_check
      _
    $region15: #{tpu_custom_call.1} parent=1 // pred_check_branch
      %38 = sbr.rel (0) target = $region17
    $region16: #{tpu_custom_call.1} parent=1 // pred_region
      %39 = dma.done [#allocation3], 256
    $region17: #{tpu_custom_call.1} parent=1 // pred_fallthru
      _
    // Predicated region
    $region18: #{tpu_custom_call.1} parent=1 // pred_check
      _
    $region19: #{tpu_custom_call.1} parent=1 // pred_check_branch
      %41 = sbr.rel (0) target = $region21
    $region20: #{tpu_custom_call.1} parent=1 // pred_region
      %42 = dma.done [#allocation6], 512
    $region21: #{tpu_custom_call.1} parent=1 // pred_fallthru
      _
    %v43 = vld [vmem:[#allocation2] sm:$0xff]
    %v44 = vld [vmem:[#allocation2 + $0x8] sm:$0xff]
    %v45 = vld [vmem:[#allocation5] sm:$0xff]
    %v46 = vld [vmem:[#allocation5 + $0x8] sm:$0xff]
    %v47 = vld [vmem:[#allocation5 + $0x10] sm:$0xff]
    %v48 = vld [vmem:[#allocation5 + $0x18] sm:$0xff]
    %v49 = vld [vmem:[%s2] sm:$0x1]
    %v51 = vlaneseq
    %v52 = vshrl.u32 %v51, 7
    %v53 = vsub.s32 0, %v52
    %v54 = vrot.slane %v49, %v53
    %vm56 = vcmask 261120
    %v58 = vsel %vm56, %v43, 0
    %v61 = vsel %vm56, %v44, 0
    %63 = vmatprep.subr.mxu0 0.0
    %64 = vmatpush1.msra.mxu0 %v45
    %65 = vmatprep.subr.mxu0 0.0
    %66 = vmatpush1.msra.mxu0 %v46
    %67 = vmatprep.subr.mxu0 0.0
    %68 = vmatpush1.msra.mxu0 %v47
    %69 = vmatprep.subr.mxu0 0.0
    %70 = vmatpush1.msra.mxu0 %v48
    %71 = vmatprep.subr.mxu0 0.0
    %72 = vmatpush1.msra.mxu0 0.0
    %73 = vmatprep.subr.mxu0 0.0
    %74 = vmatpush1.msra.mxu0 0.0
    %75 = vmatprep.subr.mxu0 0.0
    %76 = vmatpush1.msra.mxu0 0.0
    %77 = vmatprep.subr.mxu0 0.0
    %78 = vmatpush1.msra.mxu0 0.0
    %79 = vmatprep.subr.mxu0 0.0
    %80 = vmatpush1.msra.mxu0 0.0
    %81 = vmatprep.subr.mxu0 0.0
    %82 = vmatpush1.msra.mxu0 0.0
    %83 = vmatprep.subr.mxu0 0.0
    %84 = vmatpush1.msra.mxu0 0.0
    %85 = vmatprep.subr.mxu0 0.0
    %86 = vmatpush1.msra.mxu0 0.0
    %87 = vmatprep.subr.mxu0 0.0
    %88 = vmatpush1.msra.mxu0 0.0
    %89 = vmatprep.subr.mxu0 0.0
    %90 = vmatpush1.msra.mxu0 0.0
    %91 = vmatprep.subr.mxu0 0.0
    %92 = vmatpush1.msra.mxu0 0.0
    %93 = vmatprep.subr.mxu0 0.0
    %94 = vmatpush1.msra.mxu0 0.0
    %95 = vmatprep.subr.mxu0 0.0
    %96 = vmatpush1.msra.mxu0 0.0
    %97 = vmatprep.subr.mxu0 0.0
    %98 = vmatpush1.msra.mxu0 0.0
    %99 = vmatprep.subr.mxu0 0.0
    %100 = vmatpush1.msra.mxu0 0.0
    %101 = vmatprep.subr.mxu0 0.0
    %102 = vmatpush1.msra.mxu0 0.0
    %103 = vmatprep.subr.mxu0 0.0
    %104 = vmatpush1.msra.mxu0 0.0
    %105 = vmatprep.subr.mxu0 0.0
    %106 = vmatpush1.msra.mxu0 0.0
    %107 = vmatprep.subr.mxu0 0.0
    %108 = vmatpush1.msra.mxu0 0.0
    %109 = vmatprep.subr.mxu0 0.0
    %110 = vmatpush1.msra.mxu0 0.0
    %111 = vmatprep.subr.mxu0 0.0
    %112 = vmatpush1.msra.mxu0 0.0
    %113 = vmatprep.subr.mxu0 0.0
    %114 = vmatpush1.msra.mxu0 0.0
    %115 = vmatprep.subr.mxu0 0.0
    %116 = vmatpush1.msra.mxu0 0.0
    %117 = vmatprep.subr.mxu0 0.0
    %118 = vmatpush1.msra.mxu0 0.0
    %119 = vmatprep.subr.mxu0 0.0
    %120 = vmatpush1.msra.mxu0 0.0
    %121 = vmatprep.subr.mxu0 0.0
    %122 = vmatpush1.msra.mxu0 0.0
    %123 = vmatprep.subr.mxu0 0.0
    %124 = vmatpush1.msra.mxu0 0.0
    %125 = vmatprep.subr.mxu0 0.0
    %126 = vmatpush1.msra.mxu0 0.0
    %127 = vmatprep.mubr.f32.mxu0 0.0
    %128 = vmatmul.mubr.f32.gmra.mrb[0].mxu0 %v58
    %v129 = vpop.f32.mrb[0].mxu0
    %v130 = vadd.f32 %v54, %v129
    %v131 = vpop.f32.mrb[0].mxu0
    %132 = vmatprep.mubr.f32.mxu0 0.0
    %133 = vmatmul.mubr.f32.gmra.mrb[0].mxu0 %v61
    %v134 = vpop.f32.mrb[0].mxu0
    %v135 = vadd.f32 %v54, %v134
    %v136 = vpop.f32.mrb[0].mxu0
    %137 = vdwg.mxu0
    %138 = vst.msk [vmem:[#allocation7] sm:$0xff] %vm56, %v130
    %139 = vst.msk [vmem:[#allocation7 + $0x8] sm:$0xff] %vm56, %v135
    // Predicated region
    $region22: #{tpu_custom_call.1} parent=1 // pred_check
      _
    $region23: #{tpu_custom_call.1} parent=1 // pred_check_branch
      %141 = sbr.rel (0) target = $region25
    $region24: #{tpu_custom_call.1} parent=1 // pred_region
      %s143 = ssub.s32 256, 256
      %144 = vsyncadd [#allocation4], %s143
      %s145 = sshll.u32 [#allocation7], 4
      %s146 = int_to_ptr.vmem [resolvable:$true] %s145
      %151 = dma.vmem_to_hbm [thread:$0]  %s146, 256, %s3, [#allocation4], 128, 128, 8
    $region25: #{tpu_custom_call.1} parent=1 // pred_fallthru
      _
    // Predicated region
    $region26: #{tpu_custom_call.1} parent=1 // pred_check
      _
    $region27: #{tpu_custom_call.1} parent=1 // pred_check_branch
      %153 = sbr.rel (0) target = $region29
    $region28: #{tpu_custom_call.1} parent=1 // pred_region
      %154 = dma.done [#allocation4], 256
    $region29: #{tpu_custom_call.1} parent=1 // pred_fallthru
      _
    %155 = vsyncpa [#allocation3], 1
    %156 = vsyncpa [#allocation6], 1
    %157 = vsyncpa [#allocation4], 1

</llo_original>
